<compile_context>
chip_gen: v7x
topology: tpu7x:2x2x1
jax: 0.10.0
libtpu: 0.0.40
codegen_flags: <defaults>
</compile_context>

<pallas_src>
import functools

import jax
import jax.numpy as jnp
from jax.experimental import pallas as pl
from jax.experimental.pallas import tpu as pltpu


def _round_up(x, m):
    return ((x + m - 1) // m) * m


def _cdiv(a, b):
    return -(-a // b)


def _choose_tiling(B, H, W, itemsize, target_bytes=1 << 20):
    """Pick (tile_h, n_blocks): tile_h is a multiple of 8 and tiles H."""
    lanes_padded = _round_up(W, 128)              # VMEM pads lanes to 128
    h_padded = _round_up(H, 8)
    bytes_per_h_row = max(1, B * lanes_padded * itemsize)
    tile_h = (target_bytes // bytes_per_h_row) // 8 * 8
    tile_h = max(8, min(h_padded, tile_h))
    n_blocks = _cdiv(H, tile_h)
    if n_blocks == 1 and h_padded >= 16:
        n_blocks = 2                              # let both v7x TCs get work
    # Rebalance so the final block is not nearly empty.
    tile_h = _round_up(_cdiv(H, n_blocks), 8)
    n_blocks = _cdiv(H, tile_h)
    return tile_h, n_blocks


def _cls_pos_kernel(p_ref, l0_ref, l1_ref, y_ref, num_ref, den_ref, *,
                    tile_h, h_total, mask_tail):
    # Each input block is a (B, tile_h, W) slab of one channel, native dtype.
    p = p_ref[...].astype(jnp.float32)
    l0 = l0_ref[...].astype(jnp.float32)
    l1 = l1_ref[...].astype(jnp.float32)
    y = y_ref[...].astype(jnp.float32)

    # nn.BCELoss(reduction='none'): -(y*log(p) + (1-y)*log(1-p)), with each
    # log term clamped at -100 (PyTorch semantics).
    log_p = jnp.maximum(jnp.log(p), -100.0)
    log_1mp = jnp.maximum(jnp.log(1.0 - p), -100.0)
    log_loss = -(y * log_p + (1.0 - y) * log_1mp)

    one_m_p = 1.0 - p
    one_m_l0_sq = (1.0 - l0) * (1.0 - l0)
    fore_weight = y * one_m_p * one_m_p                      # pos * (1-p)^2
    back_weight = (l1 - y) * (one_m_l0_sq * one_m_l0_sq) * (p * p)
    contrib = (fore_weight + back_weight) * log_loss         # (B, tile_h, W)

    # Reduce over the batch (leading dim => plain VALU adds, no XLU).
    c_hw = jnp.sum(contrib, axis=0)                          # (tile_h, W)
    y_hw = jnp.sum(y, axis=0)                                # (tile_h, W)

    if mask_tail:
        # Edge blocks can read garbage rows past H; zero them before summing.
        h0 = pl.program_id(0) * tile_h
        rows = jax.lax.broadcasted_iota(jnp.int32, c_hw.shape, 0) + h0
        keep = rows < h_total
        c_hw = jnp.where(keep, c_hw, 0.0)
        y_hw = jnp.where(keep, y_hw, 0.0)

    # Fold 8-row sublane groups (layout-preserving reshape + VALU adds) into a
    # lane-wise (8, W) partial; the cross-lane reduce runs in the JAX epilogue.
    w = c_hw.shape[-1]
    num_ref[...] = jnp.sum(c_hw.reshape(tile_h // 8, 8, w), axis=0)
    den_ref[...] = jnp.sum(y_hw.reshape(tile_h // 8, 8, w), axis=0)


@jax.jit
def cls_pos_loss(pos_pred, pos_label):
    """Focal-weighted BCE loss of the `cls_pos` module. Returns a f32 scalar."""
    B, _, H, W = pos_pred.shape
    Bl, Cl, Hl, Wl = pos_label.shape
    assert (B, H, W) == (Bl, Hl, Wl)
    assert Cl >= 3, "pos_label needs >= 3 channels (heatmap, valid mask, centers)"

    itemsize = max(jnp.dtype(pos_pred.dtype).itemsize,
                   jnp.dtype(pos_label.dtype).itemsize)
    tile_h, n_blocks = _choose_tiling(B, H, W, itemsize)
    mask_tail = n_blocks * tile_h > H

    def chan_spec(chan):
        # (B, 1, tile_h, W) window of one channel; the channel dim is squeezed
        # away so the kernel sees a dense (B, tile_h, W) slab.
        return pl.BlockSpec((B, None, tile_h, W),
                            lambda j, c=chan: (0, c, j, 0))

    out_spec = pl.BlockSpec((None, 8, W), lambda j: (j, 0, 0))

    kernel = functools.partial(_cls_pos_kernel, tile_h=tile_h, h_total=H,
                               mask_tail=mask_tail)

    num_parts, den_parts = pl.pallas_call(
        kernel,
        out_shape=(
            jax.ShapeDtypeStruct((n_blocks, 8, W), jnp.float32),
            jax.ShapeDtypeStruct((n_blocks, 8, W), jnp.float32),
        ),
        grid_spec=pltpu.PrefetchScalarGridSpec(
            num_scalar_prefetch=0,
            grid=(n_blocks,),
            in_specs=[
                chan_spec(0),   # pos_pred  channel 0 (probability map)
                chan_spec(0),   # pos_label channel 0 (gaussian heatmap)
                chan_spec(1),   # pos_label channel 1 (valid mask)
                chan_spec(2),   # pos_label channel 2 (binary center mask)
            ],
            out_specs=[out_spec, out_spec],
        ),
        compiler_params=pltpu.CompilerParams(
            dimension_semantics=("parallel",),
        ),
    )(pos_pred, pos_label, pos_label, pos_label)

    # Tiny epilogue in plain JAX on the per-block lane-wise partials.
    num = jnp.sum(num_parts)
    den = jnp.sum(den_parts)
    return 0.01 * num / jnp.maximum(jnp.float32(1.0), den)


def _reference_loss(pos_pred, pos_label):
    """Pure-JAX reference mirroring the PyTorch module."""
    p = pos_pred[:, 0, :, :].astype(jnp.float32)
    l0 = pos_label[:, 0, :, :].astype(jnp.float32)
    l1 = pos_label[:, 1, :, :].astype(jnp.float32)
    y = pos_label[:, 2, :, :].astype(jnp.float32)
    log_p = jnp.maximum(jnp.log(p), -100.0)
    log_1mp = jnp.maximum(jnp.log(1.0 - p), -100.0)
    log_loss = -(y * log_p + (1.0 - y) * log_1mp)
    fore = y * (1.0 - p) ** 2
    back = (l1 - y) * (1.0 - l0) ** 4 * p ** 2
    focal = fore + back
    assigned = jnp.sum(y)
    return 0.01 * jnp.sum(focal * log_loss) / jnp.maximum(1.0, assigned)


if __name__ == "__main__":
    key = jax.random.PRNGKey(0)
    k_pred, k_lab = jax.random.split(key)

    B, H, W = 2, 16, 16
    C_PRED, C_LABEL = 4, 5

    # Predictions in (0, 1) as produced by a sigmoid head.
    pos_pred = jax.nn.sigmoid(
        jax.random.normal(k_pred, (B, C_PRED, H, W), dtype=jnp.float32)
    )
    # Labels: channel 0 = gaussian heatmap in [0,1], channel 1 = valid mask,
    # channel 2 = binary center mask (a few positives), rest unused.
    raw = jax.random.uniform(k_lab, (B, C_LABEL, H, W), dtype=jnp.float32)
    heat = raw[:, 0]
    valid = jnp.ones((B, H, W), dtype=jnp.float32)
    centers = (raw[:, 2] > 0.97).astype(jnp.float32)
    rest = raw[:, 3:]
    pos_label = jnp.concatenate(
        [heat[:, None], valid[:, None], centers[:, None], rest], axis=1
    )

    loss = jax.block_until_ready(cls_pos_loss(pos_pred, pos_label))
    ref = jax.block_until_ready(_reference_loss(pos_pred, pos_label))
    assert jnp.allclose(loss, ref, rtol=1e-5, atol=1e-6), (loss, ref)
    print("KERNEL_OK")
</pallas_src>

<mosaic_0001>
module attributes {stable_mosaic.version = 11 : i64} {
  func.func @_cls_pos_kernel(%arg0: i32, %arg1: memref<2x1x8x16xf32, #tpu.memory_space<vmem>>, %arg2: memref<2x1x8x16xf32, #tpu.memory_space<vmem>>, %arg3: memref<2x1x8x16xf32, #tpu.memory_space<vmem>>, %arg4: memref<2x1x8x16xf32, #tpu.memory_space<vmem>>, %arg5: memref<1x8x16xf32, #tpu.memory_space<vmem>>, %arg6: memref<1x8x16xf32, #tpu.memory_space<vmem>>) attributes {dimension_semantics = [#tpu.dimension_semantics<parallel>], iteration_bounds = array<i64: 2>, scalar_prefetch = 0 : i64, scratch_operands = 0 : i64, tpu.core_type = #tpu.core_type<tc>, window_params = [{transform_indices = @transform_0, window_bounds = array<i64: 2, 1, 8, 16>}, {transform_indices = @transform_1, window_bounds = array<i64: 2, 1, 8, 16>}, {transform_indices = @transform_2, window_bounds = array<i64: 2, 1, 8, 16>}, {transform_indices = @transform_3, window_bounds = array<i64: 2, 1, 8, 16>}, {transform_indices = @transform_4, window_bounds = array<i64: 1, 8, 16>}, {transform_indices = @transform_5, window_bounds = array<i64: 1, 8, 16>}]} {
    %c0 = arith.constant 0 : index
    %c0_0 = arith.constant 0 : index
    %c0_1 = arith.constant 0 : index
    %c0_2 = arith.constant 0 : index
    %0 = vector.load %arg1[%c0, %c0_0, %c0_1, %c0_2] : memref<2x1x8x16xf32, #tpu.memory_space<vmem>>, vector<2x1x8x16xf32>
    %1 = vector.shape_cast %0 : vector<2x1x8x16xf32> to vector<2x8x16xf32>
    %c0_3 = arith.constant 0 : index
    %c0_4 = arith.constant 0 : index
    %c0_5 = arith.constant 0 : index
    %c0_6 = arith.constant 0 : index
    %2 = vector.load %arg2[%c0_3, %c0_4, %c0_5, %c0_6] : memref<2x1x8x16xf32, #tpu.memory_space<vmem>>, vector<2x1x8x16xf32>
    %3 = vector.shape_cast %2 : vector<2x1x8x16xf32> to vector<2x8x16xf32>
    %c0_7 = arith.constant 0 : index
    %c0_8 = arith.constant 0 : index
    %c0_9 = arith.constant 0 : index
    %c0_10 = arith.constant 0 : index
    %4 = vector.load %arg3[%c0_7, %c0_8, %c0_9, %c0_10] : memref<2x1x8x16xf32, #tpu.memory_space<vmem>>, vector<2x1x8x16xf32>
    %5 = vector.shape_cast %4 : vector<2x1x8x16xf32> to vector<2x8x16xf32>
    %c0_11 = arith.constant 0 : index
    %c0_12 = arith.constant 0 : index
    %c0_13 = arith.constant 0 : index
    %c0_14 = arith.constant 0 : index
    %6 = vector.load %arg4[%c0_11, %c0_12, %c0_13, %c0_14] : memref<2x1x8x16xf32, #tpu.memory_space<vmem>>, vector<2x1x8x16xf32>
    %7 = vector.shape_cast %6 : vector<2x1x8x16xf32> to vector<2x8x16xf32>
    %8 = math.log %1 : vector<2x8x16xf32>
    %cst = arith.constant -1.000000e+02 : f32
    %9 = vector.broadcast %cst : f32 to vector<2x8x16xf32>
    %10 = arith.maximumf %8, %9 : vector<2x8x16xf32>
    %cst_15 = arith.constant 1.000000e+00 : f32
    %11 = vector.broadcast %cst_15 : f32 to vector<2x8x16xf32>
    %12 = arith.subf %11, %1 : vector<2x8x16xf32>
    %13 = math.log %12 : vector<2x8x16xf32>
    %cst_16 = arith.constant -1.000000e+02 : f32
    %14 = vector.broadcast %cst_16 : f32 to vector<2x8x16xf32>
    %15 = arith.maximumf %13, %14 : vector<2x8x16xf32>
    %16 = arith.mulf %7, %10 : vector<2x8x16xf32>
    %cst_17 = arith.constant 1.000000e+00 : f32
    %17 = vector.broadcast %cst_17 : f32 to vector<2x8x16xf32>
    %18 = arith.subf %17, %7 : vector<2x8x16xf32>
    %19 = arith.mulf %18, %15 : vector<2x8x16xf32>
    %20 = arith.addf %16, %19 : vector<2x8x16xf32>
    %cst_18 = arith.constant 0.000000e+00 : f32
    %21 = vector.broadcast %cst_18 : f32 to vector<2x8x16xf32>
    %22 = arith.subf %21, %20 : vector<2x8x16xf32>
    %cst_19 = arith.constant 1.000000e+00 : f32
    %23 = vector.broadcast %cst_19 : f32 to vector<2x8x16xf32>
    %24 = arith.subf %23, %1 : vector<2x8x16xf32>
    %cst_20 = arith.constant 1.000000e+00 : f32
    %25 = vector.broadcast %cst_20 : f32 to vector<2x8x16xf32>
    %26 = arith.subf %25, %3 : vector<2x8x16xf32>
    %cst_21 = arith.constant 1.000000e+00 : f32
    %27 = vector.broadcast %cst_21 : f32 to vector<2x8x16xf32>
    %28 = arith.subf %27, %3 : vector<2x8x16xf32>
    %29 = arith.mulf %26, %28 : vector<2x8x16xf32>
    %30 = arith.mulf %7, %24 : vector<2x8x16xf32>
    %31 = arith.mulf %30, %24 : vector<2x8x16xf32>
    %32 = arith.subf %5, %7 : vector<2x8x16xf32>
    %33 = arith.mulf %29, %29 : vector<2x8x16xf32>
    %34 = arith.mulf %32, %33 : vector<2x8x16xf32>
    %35 = arith.mulf %1, %1 : vector<2x8x16xf32>
    %36 = arith.mulf %34, %35 : vector<2x8x16xf32>
    %37 = arith.addf %31, %36 : vector<2x8x16xf32>
    %38 = arith.mulf %37, %22 : vector<2x8x16xf32>
    %cst_22 = arith.constant dense<0.000000e+00> : vector<8x16xf32>
    %39 = vector.multi_reduction <add>, %38, %cst_22 [0] : vector<2x8x16xf32> to vector<8x16xf32>
    %cst_23 = arith.constant dense<0.000000e+00> : vector<8x16xf32>
    %40 = vector.multi_reduction <add>, %7, %cst_23 [0] : vector<2x8x16xf32> to vector<8x16xf32>
    %41 = vector.shape_cast %39 : vector<8x16xf32> to vector<1x8x16xf32>
    %cst_24 = arith.constant dense<0.000000e+00> : vector<8x16xf32>
    %42 = vector.multi_reduction <add>, %41, %cst_24 [0] : vector<1x8x16xf32> to vector<8x16xf32>
    %c0_25 = arith.constant 0 : index
    %c0_26 = arith.constant 0 : index
    %c0_27 = arith.constant 0 : index
    %43 = vector.load %arg5[%c0_25, %c0_26, %c0_27] : memref<1x8x16xf32, #tpu.memory_space<vmem>>, vector<1x8x16xf32>
    %44 = vector.shape_cast %43 : vector<1x8x16xf32> to vector<8x16xf32>
    %45 = vector.shape_cast %42 : vector<8x16xf32> to vector<1x8x16xf32>
    tpu.vector_store %arg5[%c0_25, %c0_26, %c0_27], %45 {strides = array<i32>} : memref<1x8x16xf32, #tpu.memory_space<vmem>>, vector<1x8x16xf32>,
    %46 = vector.shape_cast %40 : vector<8x16xf32> to vector<1x8x16xf32>
    %cst_28 = arith.constant dense<0.000000e+00> : vector<8x16xf32>
    %47 = vector.multi_reduction <add>, %46, %cst_28 [0] : vector<1x8x16xf32> to vector<8x16xf32>
    %c0_29 = arith.constant 0 : index
    %c0_30 = arith.constant 0 : index
    %c0_31 = arith.constant 0 : index
    %48 = vector.load %arg6[%c0_29, %c0_30, %c0_31] : memref<1x8x16xf32, #tpu.memory_space<vmem>>, vector<1x8x16xf32>
    %49 = vector.shape_cast %48 : vector<1x8x16xf32> to vector<8x16xf32>
    %50 = vector.shape_cast %47 : vector<8x16xf32> to vector<1x8x16xf32>
    tpu.vector_store %arg6[%c0_29, %c0_30, %c0_31], %50 {strides = array<i32>} : memref<1x8x16xf32, #tpu.memory_space<vmem>>, vector<1x8x16xf32>,
    return
  }
  func.func @transform_0(%arg0: i32) -> (i32, i32, i32, i32) {
    %c0_i32 = arith.constant 0 : i32
    %c0_i32_0 = arith.constant 0 : i32
    %c0_i32_1 = arith.constant 0 : i32
    %c0_i32_2 = arith.constant 0 : i32
    return %c0_i32, %c0_i32_0, %arg0, %c0_i32_1 : i32, i32, i32, i32
  }
  func.func @transform_1(%arg0: i32) -> (i32, i32, i32, i32) {
    %c0_i32 = arith.constant 0 : i32
    %c0_i32_0 = arith.constant 0 : i32
    %c0_i32_1 = arith.constant 0 : i32
    %c0_i32_2 = arith.constant 0 : i32
    return %c0_i32, %c0_i32_0, %arg0, %c0_i32_1 : i32, i32, i32, i32
  }
  func.func @transform_2(%arg0: i32) -> (i32, i32, i32, i32) {
    %c0_i32 = arith.constant 0 : i32
    %c1_i32 = arith.constant 1 : i32
    %c0_i32_0 = arith.constant 0 : i32
    %c0_i32_1 = arith.constant 0 : i32
    return %c0_i32, %c1_i32, %arg0, %c0_i32_0 : i32, i32, i32, i32
  }
  func.func @transform_3(%arg0: i32) -> (i32, i32, i32, i32) {
    %c0_i32 = arith.constant 0 : i32
    %c2_i32 = arith.constant 2 : i32
    %c0_i32_0 = arith.constant 0 : i32
    %c0_i32_1 = arith.constant 0 : i32
    return %c0_i32, %c2_i32, %arg0, %c0_i32_0 : i32, i32, i32, i32
  }
  func.func @transform_4(%arg0: i32) -> (i32, i32, i32) {
    %c0_i32 = arith.constant 0 : i32
    %c0_i32_0 = arith.constant 0 : i32
    %c0_i32_1 = arith.constant 0 : i32
    return %arg0, %c0_i32, %c0_i32_0 : i32, i32, i32
  }
  func.func @transform_5(%arg0: i32) -> (i32, i32, i32) {
    %c0_i32 = arith.constant 0 : i32
    %c0_i32_0 = arith.constant 0 : i32
    %c0_i32_1 = arith.constant 0 : i32
    return %arg0, %c0_i32, %c0_i32_0 : i32, i32, i32
  }
}

</mosaic_0001>

<llo_original>
// kernel: cls_pos_loss.1
$region0: #{cls_pos_loss.1}
  #allocation0 [shape = 'u32[]', space=smem, size = 0x4, offset = 0x4, fixed_abs, tag = 'smem constant byte address 0x4 - core index']
  #allocation1 [shape = 'u32[144,128]{1,0:T(1,128)}', space=vmem, size = 0x12000, scoped, tag = 'internal scratch']
  %s0 = inlined_call_operand.hbm [shape: f32[2,4,16,16], index: 0, kind: input, shape index: {}]
  %s1 = inlined_call_operand.hbm [shape: f32[2,5,16,16], index: 1, kind: input, shape index: {}, may-alias: {1,2,3}]
  %s2 = inlined_call_operand.hbm [shape: f32[2,5,16,16], index: 2, kind: input, shape index: {}, may-alias: {1,2,3}]
  %s3 = inlined_call_operand.hbm [shape: f32[2,5,16,16], index: 3, kind: input, shape index: {}, may-alias: {1,2,3}]
  %s4 = inlined_call_operand.vmem [shape: f32[2,8,16], index: 4, kind: output, shape index: {0}]
  %s5 = inlined_call_operand.vmem [shape: f32[2,8,16], index: 5, kind: output, shape index: {1}]
  %6 = xla_tuple %s4, %s5
  %s7 = sld [smem:[#allocation0]]
  $region73: #{cls_pos_loss.1} parent=0
    _
  %s9 = ssub.s32 1, %s7
  %s10 = scalar_select 0, %s9, %s7
  $region1: #{cls_pos_loss.1} parent=0
    #allocation2 [shape = 'u8[16384]{0}', space=vmem, size = 0x4000, scoped, tag = 'input window, operand 0']
    #allocation3 [shape = 's32[2]{0}', space=sflag, size = 0x8, scoped, tag = 'scoped memory for cls_pos_loss.1']
    #allocation4 [shape = 'u8[16384]{0}', space=vmem, size = 0x4000, scoped, tag = 'input window, operand 1']
    #allocation5 [shape = 's32[2]{0}', space=sflag, size = 0x8, scoped, tag = 'scoped memory for cls_pos_loss.1']
    #allocation6 [shape = 'u8[16384]{0}', space=vmem, size = 0x4000, scoped, tag = 'input window, operand 2']
    #allocation7 [shape = 'u8[16384]{0}', space=vmem, size = 0x4000, scoped, tag = 'input window, operand 3']
    #allocation8 [shape = 's32[2]{0}', space=sflag, size = 0x8, scoped, tag = 'scoped memory for cls_pos_loss.1']
    %11 = vsyncpa [#allocation3], 0
    %s12 = scalar_lea.sflag [#allocation3], 1
    %13 = vsyncpa %s12, 0
    %14 = vsyncpa [#allocation5], 0
    %s15 = scalar_lea.sflag [#allocation5], 1
    %16 = vsyncpa %s15, 0
    %17 = vsyncpa [#allocation8], 0
    %s18 = scalar_lea.sflag [#allocation8], 1
    %19 = vsyncpa %s18, 0
    loop: start=0, step=1, limit=4
    $region2: #{cls_pos_loss.1} parent=1 // loop_pre_header
      _
    $region3: #{cls_pos_loss.1} parent=1 // loop_header
      %s21 = sphi 0, %s25
      %p22 = scmp.ge.s32.totalorder %s21, 4
      %s31 = sphi 0, %s33
      %s34 = sphi 0, %s31
      %s35 = sphi 0, %s34
      %s51 = sphi 0, %s35
      %s57 = sphi 0, %s59
      %s60 = sphi 0, %s57
      %s61 = sphi 0, %s60
      %s77 = sphi 0, %s61
      %s83 = sphi 0, %s85
      %s86 = sphi 0, %s83
      %s87 = sphi 0, %s86
      %s103 = sphi 0, %s87
      %s109 = sphi 0, %s111
      %s112 = sphi 0, %s109
      %s113 = sphi 0, %s112
      %s129 = sphi 0, %s113
      %s135 = sphi 0, %s137
      %s138 = sphi 0, %s135
      %s139 = sphi 0, %s138
      %s155 = sphi 0, %s139
      %s161 = sphi 0, %s163
      %s164 = sphi 0, %s161
      %s165 = sphi 0, %s164
      %s181 = sphi 0, %s165
    $region4: #{cls_pos_loss.1} parent=1 // loop_header_branch
      %24 = sbr.rel (%p22) target = $region8
    $region5: #{cls_pos_loss.1} parent=1 // loop_body
      %s26 = ssub.s32 %s21, 1
      %s27 = ssub.s32 %s21, 2
      %s28 = sadd.s32 %s21, 1
      %s29 = ssub.s32 %s21, %s28
      %p30 = scmp.eq.s32.totalorder %s29, 0
      %s32 = sadd.s32 %s31, 1
      %s33 = scalar_select %p30, %s31, %s32
      %p36 = pneg %p30
      %p37 = scmp.eq.s32.totalorder %s21, 1
      %p38 = por %p36, %p37
      %p39 = scmp.ne.s32.totalorder %s31, %s34
      %p40 = scmp.eq.s32.totalorder %s21, 0
      %p41 = por %p39, %p40
      %p42 = scmp.ne.s32.totalorder %s31, %s34
      %p43 = scmp.eq.s32.totalorder %s26, 1
      %p44 = por %p42, %p43
      %p45 = scmp.ne.s32.totalorder %s34, %s35
      %p46 = scmp.eq.s32.totalorder %s26, 0
      %p47 = por %p45, %p46
      %p48 = scmp.ne.s32.totalorder %s34, %s35
      %p49 = scmp.eq.s32.totalorder %s27, 1
      %p50 = por %p48, %p49
      %p52 = scmp.ne.s32.totalorder %s35, %s51
      %p53 = scmp.eq.s32.totalorder %s27, 0
      %p54 = por %p52, %p53
      %s55 = ssub.s32 %s21, %s28
      %p56 = scmp.eq.s32.totalorder %s55, 0
      %s58 = sadd.s32 %s57, 1
      %s59 = scalar_select %p56, %s57, %s58
      %p62 = pneg %p56
      %p63 = scmp.eq.s32.totalorder %s21, 1
      %p64 = por %p62, %p63
      %p65 = scmp.ne.s32.totalorder %s57, %s60
      %p66 = scmp.eq.s32.totalorder %s21, 0
      %p67 = por %p65, %p66
      %p68 = scmp.ne.s32.totalorder %s57, %s60
      %p69 = scmp.eq.s32.totalorder %s26, 1
      %p70 = por %p68, %p69
      %p71 = scmp.ne.s32.totalorder %s60, %s61
      %p72 = scmp.eq.s32.totalorder %s26, 0
      %p73 = por %p71, %p72
      %p74 = scmp.ne.s32.totalorder %s60, %s61
      %p75 = scmp.eq.s32.totalorder %s27, 1
      %p76 = por %p74, %p75
      %p78 = scmp.ne.s32.totalorder %s61, %s77
      %p79 = scmp.eq.s32.totalorder %s27, 0
      %p80 = por %p78, %p79
      %s81 = ssub.s32 %s21, %s28
      %p82 = scmp.eq.s32.totalorder %s81, 0
      %s84 = sadd.s32 %s83, 1
      %s85 = scalar_select %p82, %s83, %s84
      %p88 = pneg %p82
      %p89 = scmp.eq.s32.totalorder %s21, 1
      %p90 = por %p88, %p89
      %p91 = scmp.ne.s32.totalorder %s83, %s86
      %p92 = scmp.eq.s32.totalorder %s21, 0
      %p93 = por %p91, %p92
      %p94 = scmp.ne.s32.totalorder %s83, %s86
      %p95 = scmp.eq.s32.totalorder %s26, 1
      %p96 = por %p94, %p95
      %p97 = scmp.ne.s32.totalorder %s86, %s87
      %p98 = scmp.eq.s32.totalorder %s26, 0
      %p99 = por %p97, %p98
      %p100 = scmp.ne.s32.totalorder %s86, %s87
      %p101 = scmp.eq.s32.totalorder %s27, 1
      %p102 = por %p100, %p101
      %p104 = scmp.ne.s32.totalorder %s87, %s103
      %p105 = scmp.eq.s32.totalorder %s27, 0
      %p106 = por %p104, %p105
      %s107 = ssub.s32 %s21, %s28
      %p108 = scmp.eq.s32.totalorder %s107, 0
      %s110 = sadd.s32 %s109, 1
      %s111 = scalar_select %p108, %s109, %s110
      %p114 = pneg %p108
      %p115 = scmp.eq.s32.totalorder %s21, 1
      %p116 = por %p114, %p115
      %p117 = scmp.ne.s32.totalorder %s109, %s112
      %p118 = scmp.eq.s32.totalorder %s21, 0
      %p119 = por %p117, %p118
      %p120 = scmp.ne.s32.totalorder %s109, %s112
      %p121 = scmp.eq.s32.totalorder %s26, 1
      %p122 = por %p120, %p121
      %p123 = scmp.ne.s32.totalorder %s112, %s113
      %p124 = scmp.eq.s32.totalorder %s26, 0
      %p125 = por %p123, %p124
      %p126 = scmp.ne.s32.totalorder %s112, %s113
      %p127 = scmp.eq.s32.totalorder %s27, 1
      %p128 = por %p126, %p127
      %p130 = scmp.ne.s32.totalorder %s113, %s129
      %p131 = scmp.eq.s32.totalorder %s27, 0
      %p132 = por %p130, %p131
      %s133 = ssub.s32 %s21, %s28
      %p134 = scmp.eq.s32.totalorder %s133, 0
      %s136 = sadd.s32 %s135, 1
      %s137 = scalar_select %p134, %s135, %s136
      %p140 = pneg %p134
      %p141 = scmp.eq.s32.totalorder %s21, 1
      %p142 = por %p140, %p141
      %p143 = scmp.ne.s32.totalorder %s135, %s138
      %p144 = scmp.eq.s32.totalorder %s21, 0
      %p145 = por %p143, %p144
      %p146 = scmp.ne.s32.totalorder %s135, %s138
      %p147 = scmp.eq.s32.totalorder %s26, 1
      %p148 = por %p146, %p147
      %p149 = scmp.ne.s32.totalorder %s138, %s139
      %p150 = scmp.eq.s32.totalorder %s26, 0
      %p151 = por %p149, %p150
      %p152 = scmp.ne.s32.totalorder %s138, %s139
      %p153 = scmp.eq.s32.totalorder %s27, 1
      %p154 = por %p152, %p153
      %p156 = scmp.ne.s32.totalorder %s139, %s155
      %p157 = scmp.eq.s32.totalorder %s27, 0
      %p158 = por %p156, %p157
      %s159 = ssub.s32 %s21, %s28
      %p160 = scmp.eq.s32.totalorder %s159, 0
      %s162 = sadd.s32 %s161, 1
      %s163 = scalar_select %p160, %s161, %s162
      %p166 = pneg %p160
      %p167 = scmp.eq.s32.totalorder %s21, 1
      %p168 = por %p166, %p167
      %p169 = scmp.ne.s32.totalorder %s161, %s164
      %p170 = scmp.eq.s32.totalorder %s21, 0
      %p171 = por %p169, %p170
      %p172 = scmp.ne.s32.totalorder %s161, %s164
      %p173 = scmp.eq.s32.totalorder %s26, 1
      %p174 = por %p172, %p173
      %p175 = scmp.ne.s32.totalorder %s164, %s165
      %p176 = scmp.eq.s32.totalorder %s26, 0
      %p177 = por %p175, %p176
      %p178 = scmp.ne.s32.totalorder %s164, %s165
      %p179 = scmp.eq.s32.totalorder %s27, 1
      %p180 = por %p178, %p179
      %p182 = scmp.ne.s32.totalorder %s165, %s181
      %p183 = scmp.eq.s32.totalorder %s27, 0
      %p184 = por %p182, %p183
      %p185 = scmp.le.s32.totalorder 1, %s21
      %p186 = scmp.lt.s32.totalorder %s21, 3
      %p187 = pnand %p185, %p186
      %p188 = pneg %p187
      // Predicated region
      $region9: #{cls_pos_loss.1} parent=5 // pred_check
        _
      $region10: #{cls_pos_loss.1} parent=5 // pred_check_branch
        %190 = sbr.rel (%p187) target = $region12
      $region11: #{cls_pos_loss.1} parent=5 // pred_region
        %s191 = ssub.s32 %s21, 1
      $region12: #{cls_pos_loss.1} parent=5 // pred_fallthru
        _
      %p192 = scmp.lt.s32.totalorder %s21, 2
      // Predicated region
      $region13: #{cls_pos_loss.1} parent=5 // pred_check
        %p193 = pneg %p192
      $region14: #{cls_pos_loss.1} parent=5 // pred_check_branch
        %195 = sbr.rel (%p193) target = $region16
      $region15: #{cls_pos_loss.1} parent=5 // pred_region
        // Predicated region
        $region17: #{cls_pos_loss.1} parent=15 // pred_check
          %p196 = pneg %p41
        $region18: #{cls_pos_loss.1} parent=15 // pred_check_branch
          %198 = sbr.rel (%p196) target = $region20
        $region19: #{cls_pos_loss.1} parent=15 // pred_region
          %s199 = sand.u32 %s31, 1
          %s200 = scalar_lea.sflag [#allocation3], %s199
          %s201 = sand.u32 %s31, 1
          %s202 = smul.addr %s201, 16
          %s203 = scalar_lea.vmem [#allocation2], %s202
          %s205 = ssub.s32 256, 256
          %206 = vsyncadd %s200, %s205
          %s207 = smul.addr %s21, 128
          %s208 = scalar_lea.hbm %s0, %s207
          %s209 = sshll.u32 %s203, 4
          %s210 = int_to_ptr.vmem [resolvable:$true] %s209
          %215 = dma.hbm_to_vmem [thread:$0]  %s208, 256, %s210, %s200, 1024, 128, 8
        $region20: #{cls_pos_loss.1} parent=15 // pred_fallthru
          _
        // Predicated region
        $region21: #{cls_pos_loss.1} parent=15 // pred_check
          %p216 = pneg %p67
        $region22: #{cls_pos_loss.1} parent=15 // pred_check_branch
          %218 = sbr.rel (%p216) target = $region24
        $region23: #{cls_pos_loss.1} parent=15 // pred_region
          %s219 = sand.u32 %s21, 1
          %s220 = scalar_lea.sflag [#allocation5], %s219
          %s221 = sand.u32 %s57, 1
          %s222 = smul.addr %s221, 16
          %s223 = scalar_lea.vmem [#allocation4], %s222
          %s225 = ssub.s32 256, 256
          %226 = vsyncadd %s220, %s225
          %s227 = smul.addr %s21, 128
          %s228 = scalar_lea.hbm %s1, %s227
          %s229 = sshll.u32 %s223, 4
          %s230 = int_to_ptr.vmem [resolvable:$true] %s229
          %235 = dma.hbm_to_vmem [thread:$0]  %s228, 256, %s230, %s220, 1280, 128, 8
        $region24: #{cls_pos_loss.1} parent=15 // pred_fallthru
          _
        // Predicated region
        $region25: #{cls_pos_loss.1} parent=15 // pred_check
          %p236 = pneg %p93
        $region26: #{cls_pos_loss.1} parent=15 // pred_check_branch
          %238 = sbr.rel (%p236) target = $region28
        $region27: #{cls_pos_loss.1} parent=15 // pred_region
          %s239 = sand.u32 %s21, 1
          %s240 = scalar_lea.sflag [#allocation5], %s239
          %s241 = sand.u32 %s83, 1
          %s242 = smul.addr %s241, 16
          %s243 = scalar_lea.vmem [#allocation6], %s242
          %s245 = ssub.s32 256, 256
          %246 = vsyncadd %s240, %s245
          %s247 = sadd.s32 %s21, 2
          %s248 = smul.addr %s247, 128
          %s249 = scalar_lea.hbm %s2, %s248
          %s250 = sshll.u32 %s243, 4
          %s251 = int_to_ptr.vmem [resolvable:$true] %s250
          %256 = dma.hbm_to_vmem [thread:$0]  %s249, 256, %s251, %s240, 1280, 128, 8
        $region28: #{cls_pos_loss.1} parent=15 // pred_fallthru
          _
        // Predicated region
        $region29: #{cls_pos_loss.1} parent=15 // pred_check
          %p257 = pneg %p119
        $region30: #{cls_pos_loss.1} parent=15 // pred_check_branch
          %259 = sbr.rel (%p257) target = $region32
        $region31: #{cls_pos_loss.1} parent=15 // pred_region
          %s260 = sand.u32 %s109, 1
          %s261 = scalar_lea.sflag [#allocation8], %s260
          %s262 = sand.u32 %s109, 1
          %s263 = smul.addr %s262, 16
          %s264 = scalar_lea.vmem [#allocation7], %s263
          %s266 = ssub.s32 256, 256
          %267 = vsyncadd %s261, %s266
          %s268 = sadd.s32 %s21, 4
          %s269 = smul.addr %s268, 128
          %s270 = scalar_lea.hbm %s3, %s269
          %s271 = sshll.u32 %s264, 4
          %s272 = int_to_ptr.vmem [resolvable:$true] %s271
          %277 = dma.hbm_to_vmem [thread:$0]  %s270, 256, %s272, %s261, 1280, 128, 8
        $region32: #{cls_pos_loss.1} parent=15 // pred_fallthru
          _
      $region16: #{cls_pos_loss.1} parent=5 // pred_fallthru
        _
      %p278 = scmp.le.s32.totalorder 1, %s21
      %p279 = scmp.lt.s32.totalorder %s21, 3
      %p280 = pnand %p278, %p279
      %p281 = pneg %p280
      // Predicated region
      $region33: #{cls_pos_loss.1} parent=5 // pred_check
        _
      $region34: #{cls_pos_loss.1} parent=5 // pred_check_branch
        %283 = sbr.rel (%p280) target = $region36
      $region35: #{cls_pos_loss.1} parent=5 // pred_region
        %s284 = ssub.s32 %s21, 1
        %s285 = sand.u32 %s34, 1
        %s286 = scalar_lea.sflag [#allocation3], %s285
        %s287 = sand.u32 %s34, 1
        %s288 = smul.addr %s287, 16
        %s289 = scalar_lea.vmem [#allocation2], %s288
        // Predicated region
        $region37: #{cls_pos_loss.1} parent=35 // pred_check
          %p290 = pneg %p47
        $region38: #{cls_pos_loss.1} parent=35 // pred_check_branch
          %292 = sbr.rel (%p290) target = $region40
        $region39: #{cls_pos_loss.1} parent=35 // pred_region
          %293 = dma.done %s286, 256
        $region40: #{cls_pos_loss.1} parent=35 // pred_fallthru
          _
        %s294 = sand.u32 %s26, 1
        %s295 = scalar_lea.sflag [#allocation5], %s294
        %s296 = sand.u32 %s60, 1
        %s297 = smul.addr %s296, 16
        %s298 = scalar_lea.vmem [#allocation4], %s297
        // Predicated region
        $region41: #{cls_pos_loss.1} parent=35 // pred_check
          %p299 = pneg %p73
        $region42: #{cls_pos_loss.1} parent=35 // pred_check_branch
          %301 = sbr.rel (%p299) target = $region44
        $region43: #{cls_pos_loss.1} parent=35 // pred_region
          %302 = dma.done %s295, 256
        $region44: #{cls_pos_loss.1} parent=35 // pred_fallthru
          _
        %s303 = sand.u32 %s26, 1
        %s304 = scalar_lea.sflag [#allocation5], %s303
        %s305 = sand.u32 %s86, 1
        %s306 = smul.addr %s305, 16
        %s307 = scalar_lea.vmem [#allocation6], %s306
        // Predicated region
        $region45: #{cls_pos_loss.1} parent=35 // pred_check
          %p308 = pneg %p99
        $region46: #{cls_pos_loss.1} parent=35 // pred_check_branch
          %310 = sbr.rel (%p308) target = $region48
        $region47: #{cls_pos_loss.1} parent=35 // pred_region
          %311 = dma.done %s304, 256
        $region48: #{cls_pos_loss.1} parent=35 // pred_fallthru
          _
        %s312 = sand.u32 %s112, 1
        %s313 = scalar_lea.sflag [#allocation8], %s312
        %s314 = sand.u32 %s112, 1
        %s315 = smul.addr %s314, 16
        %s316 = scalar_lea.vmem [#allocation7], %s315
        // Predicated region
        $region49: #{cls_pos_loss.1} parent=35 // pred_check
          %p317 = pneg %p125
        $region50: #{cls_pos_loss.1} parent=35 // pred_check_branch
          %319 = sbr.rel (%p317) target = $region52
        $region51: #{cls_pos_loss.1} parent=35 // pred_region
          %320 = dma.done %s313, 256
        $region52: #{cls_pos_loss.1} parent=35 // pred_fallthru
          _
        %s321 = sand.u32 %s34, 1
        %s322 = scalar_lea.sflag [#allocation3], %s321
        %s323 = sand.u32 %s34, 1
        %s324 = smul.addr %s323, 16
        %s325 = scalar_lea.vmem [#allocation2], %s324
        %p326 = pneg %p47
        %p327 = pneg %p44
        %s328 = sand.u32 %s26, 1
        %s329 = scalar_lea.sflag [#allocation5], %s328
        %s330 = sand.u32 %s60, 1
        %s331 = smul.addr %s330, 16
        %s332 = scalar_lea.vmem [#allocation4], %s331
        %p333 = pneg %p73
        %p334 = pneg %p70
        %s335 = sand.u32 %s26, 1
        %s336 = scalar_lea.sflag [#allocation5], %s335
        %s337 = sand.u32 %s86, 1
        %s338 = smul.addr %s337, 16
        %s339 = scalar_lea.vmem [#allocation6], %s338
        %p340 = pneg %p99
        %p341 = pneg %p96
        %s342 = sand.u32 %s112, 1
        %s343 = scalar_lea.sflag [#allocation8], %s342
        %s344 = sand.u32 %s112, 1
        %s345 = smul.addr %s344, 16
        %s346 = scalar_lea.vmem [#allocation7], %s345
        %p347 = pneg %p125
        %p348 = pneg %p122
        %p349 = pneg %p151
        %p350 = pneg %p148
        %p351 = scmp.lt.s32.totalorder %s26, 1
        %s352 = scalar_select %p351, %s26, 1
        %s353 = smul.addr %s352, 8
        %s354 = scalar_lea.vmem %s4, %s353
        %p355 = pneg %p177
        %p356 = pneg %p174
        %p357 = scmp.lt.s32.totalorder %s26, 1
        %s358 = scalar_select %p357, %s26, 1
        %s359 = smul.addr %s358, 8
        %s360 = scalar_lea.vmem %s5, %s359
        %p361 = scmp.lt.s32.totalorder %s26, 1
        %s362 = scalar_select %p361, %s26, 1
        %s363 = smul.addr %s362, 8
        %s364 = scalar_lea.vmem %s4, %s363
        %p365 = scmp.lt.s32.totalorder %s26, 1
        %s366 = scalar_select %p365, %s26, 1
        %s367 = smul.addr %s366, 8
        %s368 = scalar_lea.vmem %s5, %s367
        %v369 = vld [vmem:[%s289] sm:$0xff]
        %v370 = vld [vmem:[%s289 + $0x8] sm:$0xff]
        %v371 = vld [vmem:[%s298] sm:$0xff]
        %v372 = vld [vmem:[%s298 + $0x8] sm:$0xff]
        %v373 = vld [vmem:[%s307] sm:$0xff]
        %v374 = vld [vmem:[%s307 + $0x8] sm:$0xff]
        %v375 = vld [vmem:[%s316] sm:$0xff]
        %v376 = vld [vmem:[%s316 + $0x8] sm:$0xff]
        %v377 = vlog2.pop %v369
        %v378 = vmul.f32 %v377, 0.6931472
        %v379 = vlog2.pop %v370
        %v380 = vmul.f32 %v379, 0.6931472
        %v381 = vmax.f32 %v378, -100.0
        %v382 = vmax.f32 %v380, -100.0
        %v383 = vsub.f32 1.0, %v369
        %v384 = vsub.f32 1.0, %v370
        %v385 = vlog2.pop %v383
        %v386 = vmul.f32 %v385, 0.6931472
        %v387 = vlog2.pop %v384
        %v388 = vmul.f32 %v387, 0.6931472
        %v389 = vmax.f32 %v386, -100.0
        %v390 = vmax.f32 %v388, -100.0
        %v391 = vmul.f32 %v375, %v381
        %v392 = vmul.f32 %v376, %v382
        %v393 = vsub.f32 1.0, %v375
        %v394 = vsub.f32 1.0, %v376
        %v395 = vmul.f32 %v393, %v389
        %v396 = vmul.f32 %v394, %v390
        %v397 = vadd.f32 %v391, %v395
        %v398 = vadd.f32 %v392, %v396
        %v399 = vsub.f32 0.0, %v397
        %v400 = vsub.f32 0.0, %v398
        %v401 = vsub.f32 1.0, %v371
        %v402 = vsub.f32 1.0, %v372
        %v403 = vmul.f32 %v401, %v401
        %v404 = vmul.f32 %v402, %v402
        %v405 = vmul.f32 %v375, %v383
        %v406 = vmul.f32 %v376, %v384
        %v407 = vmul.f32 %v405, %v383
        %v408 = vmul.f32 %v406, %v384
        %v409 = vsub.f32 %v373, %v375
        %v410 = vsub.f32 %v374, %v376
        %v411 = vmul.f32 %v403, %v403
        %v412 = vmul.f32 %v404, %v404
        %v413 = vmul.f32 %v409, %v411
        %v414 = vmul.f32 %v410, %v412
        %v415 = vmul.f32 %v369, %v369
        %v416 = vmul.f32 %v370, %v370
        %v417 = vmul.f32 %v413, %v415
        %v418 = vmul.f32 %v414, %v416
        %v419 = vadd.f32 %v407, %v417
        %v420 = vadd.f32 %v408, %v418
        %v421 = vmul.f32 %v419, %v399
        %v422 = vmul.f32 %v420, %v400
        %vm423 = vcmask 130048
        %v424 = vsel %vm423, %v421, 0.0
        %v425 = vsel %vm423, %v422, 0.0
        %v426 = vadd.f32 %v424, %v425
        %v427 = vsel %vm423, %v375, 0.0
        %v428 = vsel %vm423, %v376, 0.0
        %v429 = vadd.f32 %v427, %v428
        %v430 = vadd.f32 %v426, 0.0
        %431 = vst.msk [vmem:[%s364] sm:$0xff] %vm423, %v430
        %v432 = vadd.f32 %v429, 0.0
        %433 = vst.msk [vmem:[%s368] sm:$0xff] %vm423, %v432
        %p434 = scmp.lt.s32.totalorder %s26, 1
        %s435 = scalar_select %p434, %s26, 1
        %s436 = smul.addr %s435, 8
        %s437 = scalar_lea.vmem %s4, %s436
        %p438 = scmp.lt.s32.totalorder %s26, 1
        %s439 = scalar_select %p438, %s26, 1
        %s440 = smul.addr %s439, 8
        %s441 = scalar_lea.vmem %s5, %s440
        // Predicated region
        $region53: #{cls_pos_loss.1} parent=35 // pred_check
          %p442 = pneg %p148
        $region54: #{cls_pos_loss.1} parent=35 // pred_check_branch
          %444 = sbr.rel (%p442) target = $region56
        $region55: #{cls_pos_loss.1} parent=35 // pred_region
          _
        $region56: #{cls_pos_loss.1} parent=35 // pred_fallthru
          _
        // Predicated region
        $region57: #{cls_pos_loss.1} parent=35 // pred_check
          %p445 = pneg %p174
        $region58: #{cls_pos_loss.1} parent=35 // pred_check_branch
          %447 = sbr.rel (%p445) target = $region60
        $region59: #{cls_pos_loss.1} parent=35 // pred_region
          _
        $region60: #{cls_pos_loss.1} parent=35 // pred_fallthru
          _
      $region36: #{cls_pos_loss.1} parent=5 // pred_fallthru
        _
      %p448 = scmp.le.s32.totalorder 2, %s21
      // Predicated region
      $region61: #{cls_pos_loss.1} parent=5 // pred_check
        %p449 = pneg %p448
      $region62: #{cls_pos_loss.1} parent=5 // pred_check_branch
        %451 = sbr.rel (%p449) target = $region64
      $region63: #{cls_pos_loss.1} parent=5 // pred_region
        %s452 = ssub.s32 %s21, 2
        // Predicated region
        $region65: #{cls_pos_loss.1} parent=63 // pred_check
          %p453 = pneg %p154
        $region66: #{cls_pos_loss.1} parent=63 // pred_check_branch
          %455 = sbr.rel (%p453) target = $region68
        $region67: #{cls_pos_loss.1} parent=63 // pred_region
          %p456 = scmp.lt.s32.totalorder %s27, 1
          %s457 = scalar_select %p456, %s27, 1
          %s458 = smul.addr %s457, 8
          %s459 = scalar_lea.vmem %s4, %s458
        $region68: #{cls_pos_loss.1} parent=63 // pred_fallthru
          _
        // Predicated region
        $region69: #{cls_pos_loss.1} parent=63 // pred_check
          %p460 = pneg %p180
        $region70: #{cls_pos_loss.1} parent=63 // pred_check_branch
          %462 = sbr.rel (%p460) target = $region72
        $region71: #{cls_pos_loss.1} parent=63 // pred_region
          %p463 = scmp.lt.s32.totalorder %s27, 1
          %s464 = scalar_select %p463, %s27, 1
          %s465 = smul.addr %s464, 8
          %s466 = scalar_lea.vmem %s5, %s465
        $region72: #{cls_pos_loss.1} parent=63 // pred_fallthru
          _
      $region64: #{cls_pos_loss.1} parent=5 // pred_fallthru
        _
    $region6: #{cls_pos_loss.1} parent=1 // loop_footer
      %s25 = sadd.s32 1, %s21
    $region7: #{cls_pos_loss.1} parent=1 // loop_footer_branch
      %20 = sbr.rel target = $region3
    $region8: #{cls_pos_loss.1} parent=1 // loop_exit
      _
    %467 = vsyncpa [#allocation3], 1
    %s468 = scalar_lea.sflag [#allocation3], 1
    %469 = vsyncpa %s468, 1
    %470 = vsyncpa [#allocation5], 1
    %s471 = scalar_lea.sflag [#allocation5], 1
    %472 = vsyncpa %s471, 1
    %473 = vsyncpa [#allocation8], 1
    %s474 = scalar_lea.sflag [#allocation8], 1
    %475 = vsyncpa %s474, 1

</llo_original>
